<compile_context>
chip_gen: v7x
topology: tpu7x:2x2x1
jax: 0.10.0
libtpu: 0.0.40
codegen_flags: <defaults>
</compile_context>

<pallas_src>
import functools
import math

import jax
import jax.numpy as jnp
from jax.experimental import pallas as pl
from jax.experimental.pallas import tpu as pltpu


def _se_kernel(x_ref, w1t_ref, w2_ref, o_ref, *, inv_hw):
    # x_ref  : (Bt, C, HW)   input dtype
    # w1t_ref: (C, hidden) == W1.T   (f32, first  Linear, bias=False)
    # w2_ref : (C, hidden) == W2     (f32, second Linear, bias=False)

    # ---- Squeeze: global average pool over the spatial lanes (f32 acc). ----
    pooled = jnp.sum(x_ref[...], axis=-1, keepdims=True,
                     dtype=jnp.float32) * inv_hw                     # (Bt, C, 1)

    # ---- Excite: C -> hidden -> C with ReLU + sigmoid, VPU/XLU/EUP only. ----
    w1t = w1t_ref[...][None]                                         # (1, C, hidden)
    w2 = w2_ref[...][None]                                           # (1, C, hidden)
    # h[b, j] = relu(sum_c W1[j, c] * pooled[b, c])
    h = jnp.maximum(jnp.sum(w1t * pooled, axis=1, keepdims=True), 0.0)   # (Bt, 1, hidden)
    # s[b, c] = sigmoid(sum_j W2[c, j] * h[b, j])
    s = jax.nn.sigmoid(jnp.sum(w2 * h, axis=2, keepdims=True))           # (Bt, C, 1)

    # ---- Scale: re-read x (low vreg pressure) and broadcast the gate. ----
    o_ref[...] = (x_ref[...] * s.astype(o_ref.dtype)).astype(o_ref.dtype)


def _usable_vmem_bytes():
    """Physical VMEM per TensorCore minus 16 MiB headroom for compiler scratch.
    Falls back to the smallest chip (v7x, 64 MiB) if the query is unavailable."""
    physical = 64 * 2**20
    try:
        info = pltpu.get_tpu_info()
        cap = getattr(info, "vmem_capacity_bytes", None)
        if cap:
            physical = int(cap)
    except Exception:
        pass
    return physical - 16 * 2**20        # 48 MiB on v7x, 112 MiB on v5e/v6e


def _weight_block_spec(shape):
    """Resident (constant-index) weight block; single-buffered when supported."""
    index_map = lambda i: (0, 0)
    try:
        return pl.BlockSpec(shape, index_map, pipeline_mode=pl.Buffered(1))
    except TypeError:                    # older BlockSpec without pipeline_mode
        return pl.BlockSpec(shape, index_map)


def _choose_bt(b, per_batch_bytes, max_block_bytes, target_block_bytes=2 * 2**20):
    """Largest divisor Bt of B whose (Bt, C, HW) block fits the VMEM budget and
    stays near the ~1-4 MiB DMA sweet spot, while keeping grid >= 2 when B >= 2
    so both v7x TensorCores get work."""
    bt = 1
    for cand in range(1, b + 1):
        if b % cand:
            continue
        if cand * per_batch_bytes > max_block_bytes:
            break
        if b >= 2 and (b // cand) < 2:
            continue
        if cand * per_batch_bytes <= target_block_bytes:
            bt = cand
    return bt


def se_layer(x, w1, w2):
    """x: (B, C, H, W) NCHW;  w1: (C//r, C), w2: (C, C//r) — PyTorch Linear weights."""
    b, c, h, w = x.shape
    hidden = w1.shape[0]
    assert w1.shape == (hidden, c) and w2.shape == (c, hidden)

    hw = h * w
    x_flat = x.reshape(b, c, hw)            # contiguous trailing-dim reshape: free
    w1_t = w1.T.astype(jnp.float32)         # (C, hidden), pre-cast once
    w2_f = w2.astype(jnp.float32)           # (C, hidden)

    dtype_bytes = x.dtype.itemsize
    per_batch_bytes = c * hw * dtype_bytes
    weight_bytes = 2 * c * hidden * 4

    vmem_cap = _usable_vmem_bytes()
    headroom = 2 * 2**20
    # in + out blocks, each double-buffered -> 4x the block size must fit.
    max_block_bytes = (vmem_cap - weight_bytes - headroom) // 4
    if per_batch_bytes > max_block_bytes:
        # TODO(synk): two-phase spatial tiling (grid over HW chunks: phase 0
        # pools chunk-by-chunk into a (Bt, C, 1) scratch, phase 1 applies the
        # gate) for per-batch blocks exceeding the double-buffered VMEM budget.
        raise NotImplementedError(
            f"per-batch block ({per_batch_bytes} B) exceeds the VMEM budget "
            f"({max_block_bytes} B); spatial tiling not implemented")

    bt = _choose_bt(b, per_batch_bytes, max_block_bytes)
    grid = (b // bt,)
    block_bytes = bt * per_batch_bytes
    vmem_limit = int(min(vmem_cap, 4 * block_bytes + weight_bytes + headroom))
    vmem_limit = max(vmem_limit, 8 * 2**20)

    cost = pl.CostEstimate(
        flops=2 * b * c * hw + 4 * b * c * hidden,
        transcendentals=b * (c + hidden),
        bytes_accessed=2 * b * c * hw * dtype_bytes + weight_bytes,
    )

    out_flat = pl.pallas_call(
        functools.partial(_se_kernel, inv_hw=1.0 / hw),
        out_shape=jax.ShapeDtypeStruct((b, c, hw), x.dtype),
        grid=grid,
        in_specs=[
            pl.BlockSpec((bt, c, hw), lambda i: (i, 0, 0)),
            _weight_block_spec((c, hidden)),
            _weight_block_spec((c, hidden)),
        ],
        out_specs=pl.BlockSpec((bt, c, hw), lambda i: (i, 0, 0)),
        compiler_params=pltpu.CompilerParams(
            dimension_semantics=("parallel",),
            vmem_limit_bytes=vmem_limit,
        ),
        cost_estimate=cost,
    )(x_flat, w1_t, w2_f)

    return out_flat.reshape(b, c, h, w)


def se_layer_ref(x, w1, w2):
    """Pure-JAX reference mirroring the PyTorch forward."""
    y = jnp.mean(x.astype(jnp.float32), axis=(2, 3))           # (B, C)
    y = jnp.maximum(y @ w1.T.astype(jnp.float32), 0.0)         # (B, C//r)
    y = jax.nn.sigmoid(y @ w2.T.astype(jnp.float32))           # (B, C)
    return (x.astype(jnp.float32) * y[:, :, None, None]).astype(x.dtype)


def init_params(key, channel, reduction=16):
    """Deterministic init matching nn.Linear default bounds."""
    hidden = channel // reduction
    k1, k2 = jax.random.split(key)
    bound1 = 1.0 / math.sqrt(channel)
    bound2 = 1.0 / math.sqrt(hidden)
    w1 = jax.random.uniform(k1, (hidden, channel), jnp.float32, -bound1, bound1)
    w2 = jax.random.uniform(k2, (channel, hidden), jnp.float32, -bound2, bound2)
    return w1, w2


if __name__ == "__main__":
    key = jax.random.PRNGKey(0)
    kx, kp = jax.random.split(key)

    B, C, H, W = 2, 32, 16, 16   # C divisible by reduction=16 -> hidden=2
    reduction = 16

    x = jax.random.normal(kx, (B, C, H, W), dtype=jnp.float32)
    w1, w2 = init_params(kp, C, reduction)

    se = jax.jit(se_layer)
    out = se(x, w1, w2)
    out = jax.block_until_ready(out)

    ref = se_layer_ref(x, w1, w2)
    assert out.shape == (B, C, H, W)
    assert jnp.allclose(out, ref, atol=1e-5, rtol=1e-5), "mismatch vs reference"

    print("KERNEL_OK")
</pallas_src>

<mosaic_0001>
module attributes {stable_mosaic.version = 11 : i64} {
  func.func @_se_kernel(%arg0: i32, %arg1: memref<1x32x256xf32, #tpu.memory_space<vmem>>, %arg2: memref<32x2xf32, #tpu.memory_space<vmem>>, %arg3: memref<32x2xf32, #tpu.memory_space<vmem>>, %arg4: memref<1x32x256xf32, #tpu.memory_space<vmem>>) attributes {dimension_semantics = [#tpu.dimension_semantics<parallel>], iteration_bounds = array<i64: 2>, scalar_prefetch = 0 : i64, scratch_operands = 0 : i64, tpu.core_type = #tpu.core_type<tc>, window_params = [{transform_indices = @transform_0, window_bounds = array<i64: 1, 32, 256>}, {pipeline_mode = #tpu.pipeline_mode<synchronous>, transform_indices = @transform_1, window_bounds = array<i64: 32, 2>}, {pipeline_mode = #tpu.pipeline_mode<synchronous>, transform_indices = @transform_2, window_bounds = array<i64: 32, 2>}, {transform_indices = @transform_3, window_bounds = array<i64: 1, 32, 256>}]} {
    %c0 = arith.constant 0 : index
    %c0_0 = arith.constant 0 : index
    %c0_1 = arith.constant 0 : index
    %0 = vector.load %arg1[%c0, %c0_0, %c0_1] : memref<1x32x256xf32, #tpu.memory_space<vmem>>, vector<1x32x256xf32>
    %cst = arith.constant dense<0.000000e+00> : vector<1x32xf32>
    %1 = vector.multi_reduction <add>, %0, %cst [2] : vector<1x32x256xf32> to vector<1x32xf32>
    %2 = vector.shape_cast %1 : vector<1x32xf32> to vector<1x32x1xf32>
    %cst_2 = arith.constant 3.906250e-03 : f32
    %3 = vector.broadcast %cst_2 : f32 to vector<1x32x1xf32>
    %4 = arith.mulf %2, %3 : vector<1x32x1xf32>
    %c0_3 = arith.constant 0 : index
    %c0_4 = arith.constant 0 : index
    %5 = vector.load %arg2[%c0_3, %c0_4] : memref<32x2xf32, #tpu.memory_space<vmem>>, vector<32x2xf32>
    %6 = vector.shape_cast %5 : vector<32x2xf32> to vector<1x32x2xf32>
    %c0_5 = arith.constant 0 : index
    %c0_6 = arith.constant 0 : index
    %7 = vector.load %arg3[%c0_5, %c0_6] : memref<32x2xf32, #tpu.memory_space<vmem>>, vector<32x2xf32>
    %8 = vector.shape_cast %7 : vector<32x2xf32> to vector<1x32x2xf32>
    %9 = vector.broadcast %4 : vector<1x32x1xf32> to vector<1x32x2xf32>
    %10 = arith.mulf %6, %9 : vector<1x32x2xf32>
    %cst_7 = arith.constant dense<0.000000e+00> : vector<1x2xf32>
    %11 = vector.multi_reduction <add>, %10, %cst_7 [1] : vector<1x32x2xf32> to vector<1x2xf32>
    %12 = vector.shape_cast %11 : vector<1x2xf32> to vector<1x1x2xf32>
    %cst_8 = arith.constant 0.000000e+00 : f32
    %13 = vector.broadcast %cst_8 : f32 to vector<1x1x2xf32>
    %14 = arith.maximumf %12, %13 : vector<1x1x2xf32>
    %15 = vector.broadcast %14 : vector<1x1x2xf32> to vector<1x32x2xf32>
    %16 = arith.mulf %8, %15 : vector<1x32x2xf32>
    %cst_9 = arith.constant dense<0.000000e+00> : vector<1x32xf32>
    %17 = vector.multi_reduction <add>, %16, %cst_9 [2] : vector<1x32x2xf32> to vector<1x32xf32>
    %18 = vector.shape_cast %17 : vector<1x32xf32> to vector<1x32x1xf32>
    %19 = arith.negf %18 : vector<1x32x1xf32>
    %20 = math.exp %19 : vector<1x32x1xf32>
    %cst_10 = arith.constant 1.000000e+00 : f32
    %21 = vector.broadcast %cst_10 : f32 to vector<1x32x1xf32>
    %22 = arith.addf %21, %20 : vector<1x32x1xf32>
    %23 = arith.divf %21, %22 : vector<1x32x1xf32>
    %c0_11 = arith.constant 0 : index
    %c0_12 = arith.constant 0 : index
    %c0_13 = arith.constant 0 : index
    %24 = vector.load %arg1[%c0_11, %c0_12, %c0_13] : memref<1x32x256xf32, #tpu.memory_space<vmem>>, vector<1x32x256xf32>
    %25 = vector.broadcast %23 : vector<1x32x1xf32> to vector<1x32x256xf32>
    %26 = arith.mulf %24, %25 : vector<1x32x256xf32>
    %c0_14 = arith.constant 0 : index
    %c0_15 = arith.constant 0 : index
    %c0_16 = arith.constant 0 : index
    %27 = vector.load %arg4[%c0_14, %c0_15, %c0_16] : memref<1x32x256xf32, #tpu.memory_space<vmem>>, vector<1x32x256xf32>
    tpu.vector_store %arg4[%c0_14, %c0_15, %c0_16], %26 {strides = array<i32>} : memref<1x32x256xf32, #tpu.memory_space<vmem>>, vector<1x32x256xf32>,
    return
  }
  func.func @transform_0(%arg0: i32) -> (i32, i32, i32) {
    %c0_i32 = arith.constant 0 : i32
    %c0_i32_0 = arith.constant 0 : i32
    %c0_i32_1 = arith.constant 0 : i32
    return %arg0, %c0_i32, %c0_i32_0 : i32, i32, i32
  }
  func.func @transform_1(%arg0: i32) -> (i32, i32) {
    %c0_i32 = arith.constant 0 : i32
    %c0_i32_0 = arith.constant 0 : i32
    %c0_i32_1 = arith.constant 0 : i32
    return %c0_i32, %c0_i32_0 : i32, i32
  }
  func.func @transform_2(%arg0: i32) -> (i32, i32) {
    %c0_i32 = arith.constant 0 : i32
    %c0_i32_0 = arith.constant 0 : i32
    %c0_i32_1 = arith.constant 0 : i32
    return %c0_i32, %c0_i32_0 : i32, i32
  }
  func.func @transform_3(%arg0: i32) -> (i32, i32, i32) {
    %c0_i32 = arith.constant 0 : i32
    %c0_i32_0 = arith.constant 0 : i32
    %c0_i32_1 = arith.constant 0 : i32
    return %arg0, %c0_i32, %c0_i32_0 : i32, i32, i32
  }
}

</mosaic_0001>

<llo_original>
// kernel: se_layer.1
$region0: #{se_layer.1}
  #allocation0 [shape = 'u32[]', space=smem, size = 0x4, offset = 0x4, fixed_abs, tag = 'smem constant byte address 0x4 - core index']
  #allocation1 [shape = 'u32[144,128]{1,0:T(1,128)}', space=vmem, size = 0x12000, scoped, tag = 'internal scratch']
  %s0 = inlined_call_operand.vmem [shape: f32[2,32,256], index: 0, kind: input, shape index: {}]
  %s1 = inlined_call_operand.vmem [shape: f32[32,2], index: 1, kind: input, shape index: {}]
  %s2 = inlined_call_operand.vmem [shape: f32[32,2], index: 2, kind: input, shape index: {}]
  %s3 = inlined_call_operand.vmem [shape: f32[2,32,256], index: 3, kind: output, shape index: {}]
  %s4 = sld [smem:[#allocation0]]
  $region45: #{se_layer.1} parent=0
    _
  %s6 = ssub.s32 1, %s4
  %s7 = scalar_select 0, %s6, %s4
  loop: start=0, step=1, limit=4
  $region2: #{se_layer.1} parent=0 // loop_pre_header
    _
  $region3: #{se_layer.1} parent=0 // loop_header
    %s9 = sphi 0, %s13
    %p10 = scmp.ge.s32.totalorder %s9, 4
    %s19 = sphi 0, %s21
    %s22 = sphi 0, %s19
    %s23 = sphi 0, %s22
    %s39 = sphi 0, %s23
    %s43 = sphi 0, %s43
    %s45 = sphi 0, %s43
    %s46 = sphi 0, %s45
    %s60 = sphi 0, %s46
    %s64 = sphi 0, %s64
    %s66 = sphi 0, %s64
    %s67 = sphi 0, %s66
    %s81 = sphi 0, %s67
    %s87 = sphi 0, %s89
    %s90 = sphi 0, %s87
    %s91 = sphi 0, %s90
    %s107 = sphi 0, %s91
  $region4: #{se_layer.1} parent=0 // loop_header_branch
    %12 = sbr.rel (%p10) target = $region8
  $region5: #{se_layer.1} parent=0 // loop_body
    %s14 = ssub.s32 %s9, 1
    %s15 = ssub.s32 %s9, 2
    %s16 = sadd.s32 %s9, 1
    %s17 = ssub.s32 %s9, %s16
    %p18 = scmp.eq.s32.totalorder %s17, 0
    %s20 = sadd.s32 %s19, 1
    %s21 = scalar_select %p18, %s19, %s20
    %p24 = pneg %p18
    %p25 = scmp.eq.s32.totalorder %s9, 1
    %p26 = por %p24, %p25
    %p27 = scmp.ne.s32.totalorder %s19, %s22
    %p28 = scmp.eq.s32.totalorder %s9, 0
    %p29 = por %p27, %p28
    %p30 = scmp.ne.s32.totalorder %s19, %s22
    %p31 = scmp.eq.s32.totalorder %s14, 1
    %p32 = por %p30, %p31
    %p33 = scmp.ne.s32.totalorder %s22, %s23
    %p34 = scmp.eq.s32.totalorder %s14, 0
    %p35 = por %p33, %p34
    %p36 = scmp.ne.s32.totalorder %s22, %s23
    %p37 = scmp.eq.s32.totalorder %s15, 1
    %p38 = por %p36, %p37
    %p40 = scmp.ne.s32.totalorder %s23, %s39
    %p41 = scmp.eq.s32.totalorder %s15, 0
    %p42 = por %p40, %p41
    %s44 = sadd.s32 %s43, 1
    %p47 = scmp.eq.s32.totalorder %s9, 1
    %p48 = scmp.ne.s32.totalorder %s43, %s45
    %p49 = scmp.eq.s32.totalorder %s9, 0
    %p50 = por %p48, %p49
    %p51 = scmp.ne.s32.totalorder %s43, %s45
    %p52 = scmp.eq.s32.totalorder %s14, 1
    %p53 = por %p51, %p52
    %p54 = scmp.ne.s32.totalorder %s45, %s46
    %p55 = scmp.eq.s32.totalorder %s14, 0
    %p56 = por %p54, %p55
    %p57 = scmp.ne.s32.totalorder %s45, %s46
    %p58 = scmp.eq.s32.totalorder %s15, 1
    %p59 = por %p57, %p58
    %p61 = scmp.ne.s32.totalorder %s46, %s60
    %p62 = scmp.eq.s32.totalorder %s15, 0
    %p63 = por %p61, %p62
    %s65 = sadd.s32 %s64, 1
    %p68 = scmp.eq.s32.totalorder %s9, 1
    %p69 = scmp.ne.s32.totalorder %s64, %s66
    %p70 = scmp.eq.s32.totalorder %s9, 0
    %p71 = por %p69, %p70
    %p72 = scmp.ne.s32.totalorder %s64, %s66
    %p73 = scmp.eq.s32.totalorder %s14, 1
    %p74 = por %p72, %p73
    %p75 = scmp.ne.s32.totalorder %s66, %s67
    %p76 = scmp.eq.s32.totalorder %s14, 0
    %p77 = por %p75, %p76
    %p78 = scmp.ne.s32.totalorder %s66, %s67
    %p79 = scmp.eq.s32.totalorder %s15, 1
    %p80 = por %p78, %p79
    %p82 = scmp.ne.s32.totalorder %s67, %s81
    %p83 = scmp.eq.s32.totalorder %s15, 0
    %p84 = por %p82, %p83
    %s85 = ssub.s32 %s9, %s16
    %p86 = scmp.eq.s32.totalorder %s85, 0
    %s88 = sadd.s32 %s87, 1
    %s89 = scalar_select %p86, %s87, %s88
    %p92 = pneg %p86
    %p93 = scmp.eq.s32.totalorder %s9, 1
    %p94 = por %p92, %p93
    %p95 = scmp.ne.s32.totalorder %s87, %s90
    %p96 = scmp.eq.s32.totalorder %s9, 0
    %p97 = por %p95, %p96
    %p98 = scmp.ne.s32.totalorder %s87, %s90
    %p99 = scmp.eq.s32.totalorder %s14, 1
    %p100 = por %p98, %p99
    %p101 = scmp.ne.s32.totalorder %s90, %s91
    %p102 = scmp.eq.s32.totalorder %s14, 0
    %p103 = por %p101, %p102
    %p104 = scmp.ne.s32.totalorder %s90, %s91
    %p105 = scmp.eq.s32.totalorder %s15, 1
    %p106 = por %p104, %p105
    %p108 = scmp.ne.s32.totalorder %s91, %s107
    %p109 = scmp.eq.s32.totalorder %s15, 0
    %p110 = por %p108, %p109
    %p111 = scmp.le.s32.totalorder 1, %s9
    %p112 = scmp.lt.s32.totalorder %s9, 3
    %p113 = pnand %p111, %p112
    %p114 = pneg %p113
    // Predicated region
    $region9: #{se_layer.1} parent=5 // pred_check
      _
    $region10: #{se_layer.1} parent=5 // pred_check_branch
      %116 = sbr.rel (%p113) target = $region12
    $region11: #{se_layer.1} parent=5 // pred_region
      %s117 = ssub.s32 %s9, 1
      // Predicated region
      $region13: #{se_layer.1} parent=11 // pred_check
        %p118 = pneg %p56
      $region14: #{se_layer.1} parent=11 // pred_check_branch
        %120 = sbr.rel (%p118) target = $region16
      $region15: #{se_layer.1} parent=11 // pred_region
        _
      $region16: #{se_layer.1} parent=11 // pred_fallthru
        _
      // Predicated region
      $region17: #{se_layer.1} parent=11 // pred_check
        %p121 = pneg %p77
      $region18: #{se_layer.1} parent=11 // pred_check_branch
        %123 = sbr.rel (%p121) target = $region20
      $region19: #{se_layer.1} parent=11 // pred_region
        _
      $region20: #{se_layer.1} parent=11 // pred_fallthru
        _
    $region12: #{se_layer.1} parent=5 // pred_fallthru
      _
    %p124 = scmp.lt.s32.totalorder %s9, 2
    // Predicated region
    $region21: #{se_layer.1} parent=5 // pred_check
      %p125 = pneg %p124
    $region22: #{se_layer.1} parent=5 // pred_check_branch
      %127 = sbr.rel (%p125) target = $region24
    $region23: #{se_layer.1} parent=5 // pred_region
      // Predicated region
      $region25: #{se_layer.1} parent=23 // pred_check
        %p128 = pneg %p29
      $region26: #{se_layer.1} parent=23 // pred_check_branch
        %130 = sbr.rel (%p128) target = $region28
      $region27: #{se_layer.1} parent=23 // pred_region
        %p131 = scmp.lt.s32.totalorder %s9, 1
        %s132 = scalar_select %p131, %s9, 1
        %s133 = smul.addr %s132, 8
        %s134 = smul.addr %s133, 8
        %s135 = scalar_lea.vmem %s0, %s134
      $region28: #{se_layer.1} parent=23 // pred_fallthru
        _
    $region24: #{se_layer.1} parent=5 // pred_fallthru
      _
    %p136 = scmp.le.s32.totalorder 1, %s9
    %p137 = scmp.lt.s32.totalorder %s9, 3
    %p138 = pnand %p136, %p137
    %p139 = pneg %p138
    // Predicated region
    $region29: #{se_layer.1} parent=5 // pred_check
      _
    $region30: #{se_layer.1} parent=5 // pred_check_branch
      %141 = sbr.rel (%p138) target = $region32
    $region31: #{se_layer.1} parent=5 // pred_region
      %s142 = ssub.s32 %s9, 1
      %p143 = scmp.lt.s32.totalorder %s14, 1
      %s144 = scalar_select %p143, %s14, 1
      %s145 = smul.addr %s144, 8
      %s146 = smul.addr %s145, 8
      %s147 = scalar_lea.vmem %s0, %s146
      %p148 = pneg %p35
      %p149 = pneg %p32
      %p150 = pneg %p56
      %p151 = pneg %p53
      %p152 = pneg %p77
      %p153 = pneg %p74
      %p154 = pneg %p103
      %p155 = pneg %p100
      %p156 = scmp.lt.s32.totalorder %s14, 1
      %s157 = scalar_select %p156, %s14, 1
      %s158 = smul.addr %s157, 8
      %s159 = smul.addr %s158, 8
      %s160 = scalar_lea.vmem %s3, %s159
      %p161 = scmp.lt.s32.totalorder %s14, 1
      %s162 = scalar_select %p161, %s14, 1
      %s163 = smul.addr %s162, 8
      %s164 = smul.addr %s163, 8
      %s165 = scalar_lea.vmem %s0, %s164
      %p166 = scmp.lt.s32.totalorder %s14, 1
      %s167 = scalar_select %p166, %s14, 1
      %s168 = smul.addr %s167, 8
      %s169 = smul.addr %s168, 8
      %s170 = scalar_lea.vmem %s3, %s169
      %v171 = vld [vmem:[%s165] sm:$0xff]
      %v172 = vld [vmem:[%s165 + $0x8] sm:$0xff]
      %v173 = vld [vmem:[%s165 + $0x10] sm:$0xff]
      %v174 = vld [vmem:[%s165 + $0x18] sm:$0xff]
      %v175 = vld [vmem:[%s165 + $0x20] sm:$0xff]
      %v176 = vld [vmem:[%s165 + $0x28] sm:$0xff]
      %v177 = vld [vmem:[%s165 + $0x30] sm:$0xff]
      %v178 = vld [vmem:[%s165 + $0x38] sm:$0xff]
      %v179 = vadd.f32 %v171, %v172
      %180 = vadd.xlane.f32.xlu0 %v179
      %v181 = vpop.xlane.xlu0 %180
      %v182 = vadd.f32 %v173, %v174
      %183 = vadd.xlane.f32.xlu0 %v182
      %v184 = vpop.xlane.xlu0 %183
      %v185 = vadd.f32 %v175, %v176
      %186 = vadd.xlane.f32.xlu0 %v185
      %v187 = vpop.xlane.xlu0 %186
      %v188 = vadd.f32 %v177, %v178
      %189 = vadd.xlane.f32.xlu0 %v188
      %v190 = vpop.xlane.xlu0 %189
      %v191 = vmul.f32 %v181, 0.00390625
      %v192 = vmul.f32 %v184, 0.00390625
      %v193 = vmul.f32 %v187, 0.00390625
      %v194 = vmul.f32 %v190, 0.00390625
      %v195 = vld [vmem:[%s1] sm:$0xff]
      %v196 = vld [vmem:[%s1 + $0x8] sm:$0xff]
      %v197 = vld [vmem:[%s1 + $0x10] sm:$0xff]
      %v198 = vld [vmem:[%s1 + $0x18] sm:$0xff]
      %v199 = vld [vmem:[%s2] sm:$0xff]
      %v200 = vld [vmem:[%s2 + $0x8] sm:$0xff]
      %v201 = vld [vmem:[%s2 + $0x10] sm:$0xff]
      %v202 = vld [vmem:[%s2 + $0x18] sm:$0xff]
      %v203 = vmul.f32 %v195, %v191
      %v204 = vmul.f32 %v196, %v192
      %v205 = vmul.f32 %v197, %v193
      %v206 = vmul.f32 %v198, %v194
      %vm207 = vcmask 15360
      %v208 = vsel %vm207, %v203, 0.0
      %v209 = vsel %vm207, %v204, 0.0
      %v210 = vadd.f32 %v208, %v209
      %v211 = vsel %vm207, %v205, 0.0
      %v212 = vadd.f32 %v210, %v211
      %v213 = vsel %vm207, %v206, 0.0
      %v214 = vadd.f32 %v212, %v213
      %v215 = vrot.slane %v214, 4
      %v216 = vadd.f32 %v214, %v215
      %v217 = vrot.slane %v216, 2
      %v218 = vadd.f32 %v216, %v217
      %v219 = vrot.slane %v218, 1
      %v220 = vadd.f32 %v218, %v219
      %v221 = vmax.f32 %v220, 0.0
      %v222 = vmul.f32 %v199, %v221
      %v223 = vmul.f32 %v200, %v221
      %v224 = vmul.f32 %v201, %v221
      %v225 = vmul.f32 %v202, %v221
      %v226 = vsel %vm207, %v222, 0.0
      %227 = vadd.xlane.f32.xlu0 %v226
      %v228 = vpop.xlane.xlu0 %227
      %v229 = vsel %vm207, %v223, 0.0
      %230 = vadd.xlane.f32.xlu0 %v229
      %v231 = vpop.xlane.xlu0 %230
      %v232 = vsel %vm207, %v224, 0.0
      %233 = vadd.xlane.f32.xlu0 %v232
      %v234 = vpop.xlane.xlu0 %233
      %v235 = vsel %vm207, %v225, 0.0
      %236 = vadd.xlane.f32.xlu0 %v235
      %v237 = vpop.xlane.xlu0 %236
      %v238 = vxor.u32 %v228, 2147483648
      %v239 = vxor.u32 %v231, 2147483648
      %v240 = vxor.u32 %v234, 2147483648
      %v241 = vxor.u32 %v237, 2147483648
      %v242 = vmul.f32 %v238, 1.442695
      %v243 = vpow.pop %v242
      %v244 = vmul.f32 %v239, 1.442695
      %v245 = vpow.pop %v244
      %v246 = vmul.f32 %v240, 1.442695
      %v247 = vpow.pop %v246
      %v248 = vmul.f32 %v241, 1.442695
      %v249 = vpow.pop %v248
      %v250 = vadd.f32 %v243, 1.0
      %v251 = vadd.f32 %v245, 1.0
      %v252 = vadd.f32 %v247, 1.0
      %v253 = vadd.f32 %v249, 1.0
      %v254 = vrcp.pop %v250
      %v255 = vmul.f32 1.0, %v254
      %v256 = vrcp.pop %v251
      %v257 = vmul.f32 1.0, %v256
      %v258 = vrcp.pop %v252
      %v259 = vmul.f32 1.0, %v258
      %v260 = vrcp.pop %v253
      %v261 = vmul.f32 1.0, %v260
      %v262 = vmul.f32 %v171, %v255
      %v263 = vmul.f32 %v172, %v255
      %v264 = vmul.f32 %v173, %v257
      %v265 = vmul.f32 %v174, %v257
      %v266 = vmul.f32 %v175, %v259
      %v267 = vmul.f32 %v176, %v259
      %v268 = vmul.f32 %v177, %v261
      %v269 = vmul.f32 %v178, %v261
      %270 = vst [vmem:[%s170] sm:$0xff] %v262
      %271 = vst [vmem:[%s170 + $0x8] sm:$0xff] %v263
      %272 = vst [vmem:[%s170 + $0x10] sm:$0xff] %v264
      %273 = vst [vmem:[%s170 + $0x18] sm:$0xff] %v265
      %274 = vst [vmem:[%s170 + $0x20] sm:$0xff] %v266
      %275 = vst [vmem:[%s170 + $0x28] sm:$0xff] %v267
      %276 = vst [vmem:[%s170 + $0x30] sm:$0xff] %v268
      %277 = vst [vmem:[%s170 + $0x38] sm:$0xff] %v269
      %p278 = scmp.lt.s32.totalorder %s14, 1
      %s279 = scalar_select %p278, %s14, 1
      %s280 = smul.addr %s279, 8
      %s281 = smul.addr %s280, 8
      %s282 = scalar_lea.vmem %s3, %s281
      // Predicated region
      $region33: #{se_layer.1} parent=31 // pred_check
        %p283 = pneg %p100
      $region34: #{se_layer.1} parent=31 // pred_check_branch
        %285 = sbr.rel (%p283) target = $region36
      $region35: #{se_layer.1} parent=31 // pred_region
        _
      $region36: #{se_layer.1} parent=31 // pred_fallthru
        _
    $region32: #{se_layer.1} parent=5 // pred_fallthru
      _
    %p286 = scmp.le.s32.totalorder 2, %s9
    // Predicated region
    $region37: #{se_layer.1} parent=5 // pred_check
      %p287 = pneg %p286
    $region38: #{se_layer.1} parent=5 // pred_check_branch
      %289 = sbr.rel (%p287) target = $region40
    $region39: #{se_layer.1} parent=5 // pred_region
      %s290 = ssub.s32 %s9, 2
      // Predicated region
      $region41: #{se_layer.1} parent=39 // pred_check
        %p291 = pneg %p106
      $region42: #{se_layer.1} parent=39 // pred_check_branch
        %293 = sbr.rel (%p291) target = $region44
      $region43: #{se_layer.1} parent=39 // pred_region
        %p294 = scmp.lt.s32.totalorder %s15, 1
        %s295 = scalar_select %p294, %s15, 1
        %s296 = smul.addr %s295, 8
        %s297 = smul.addr %s296, 8
        %s298 = scalar_lea.vmem %s3, %s297
      $region44: #{se_layer.1} parent=39 // pred_fallthru
        _
    $region40: #{se_layer.1} parent=5 // pred_fallthru
      _
  $region6: #{se_layer.1} parent=0 // loop_footer
    %s13 = sadd.s32 1, %s9
  $region7: #{se_layer.1} parent=0 // loop_footer_branch
    %8 = sbr.rel target = $region3
  $region8: #{se_layer.1} parent=0 // loop_exit
    _

</llo_original>
